<compile_context>
chip_gen: v7x
topology: tpu7x:2x2x1
jax: 0.10.0
libtpu: 0.0.40
codegen_flags: <defaults>
</compile_context>

<pallas_src>
import math
from functools import partial

import jax
import jax.numpy as jnp
from jax import lax
from jax.experimental import pallas as pl
from jax.experimental.pallas import tpu as pltpu


def _choose_tile(requested, dim, align):
    """Largest legal tile <= requested: full extent, or a multiple of `align`."""
    if dim <= requested:
        return dim                       # full-extent block is always legal
    return max(align, (requested // align) * align)


# --------------------------------------------------------------------------
# W prologue: logits-head weights are normalized once, transposed and stored
# in the matmul dtype.  Output: W_hat^T with shape (D, C).
# --------------------------------------------------------------------------
def _w_normalize_t_kernel(w_ref, wt_ref, *, block_c, c_rows, mask_rows,
                          matmul_dtype, eps):
    j = pl.program_id(0)
    w = w_ref[...].astype(jnp.float32)                       # (TC, D)
    if mask_rows:
        # Tail rows of the last block are OOB garbage -> replace with 1.0 so
        # rsqrt never sees Inf/NaN.  (Their output columns are dropped anyway.)
        row = lax.broadcasted_iota(jnp.int32, w.shape, 0) + j * block_c
        w = jnp.where(row < c_rows, w, 1.0)
    ssq = jnp.sum(w * w, axis=-1, keepdims=True)
    if eps:
        ssq = ssq + eps
    w_hat = w * lax.rsqrt(ssq)                                # f32 math
    wt_ref[...] = jnp.transpose(w_hat).astype(matmul_dtype)   # (D, TC)


def _normalize_weights_transposed(weights, *, tc, matmul_dtype, eps,
                                  vmem_limit_bytes):
    C, D = weights.shape
    TC = _choose_tile(tc, C, 128)
    mat_bytes = jnp.dtype(matmul_dtype).itemsize
    budget = (vmem_limit_bytes * 3) // 5
    # in double-buffer (f32) + out double-buffer + f32 normalize/transpose temps
    while (TC * D * (2 * 4 + 2 * mat_bytes + 3 * 4)) > budget \
            and TC >= 256 and TC % 256 == 0:
        TC //= 2
    n = pl.cdiv(C, TC)
    kernel = partial(_w_normalize_t_kernel, block_c=TC, c_rows=C,
                     mask_rows=(C % TC != 0), matmul_dtype=matmul_dtype,
                     eps=float(eps))
    return pl.pallas_call(
        kernel,
        out_shape=jax.ShapeDtypeStruct((D, C), matmul_dtype),
        grid_spec=pltpu.PrefetchScalarGridSpec(
            num_scalar_prefetch=0,
            grid=(n,),
            in_specs=[pl.BlockSpec((TC, D), lambda j: (j, 0))],
            out_specs=pl.BlockSpec((D, TC), lambda j: (0, j)),
        ),
        compiler_params=pltpu.CompilerParams(
            dimension_semantics=("parallel",),
            vmem_limit_bytes=int(vmem_limit_bytes),
        ),
    )(weights)


# --------------------------------------------------------------------------
# Main kernel: one (TM, TN) logits tile.
# --------------------------------------------------------------------------
def _nip_main_kernel(feat_ref, w_ref, out_ref, fhat_ref, *,
                     scale, matmul_dtype, w_pre_normalized,
                     block_m, block_n, b_rows, c_rows,
                     mask_feat_rows, mask_w_rows, eps):
    i = pl.program_id(0)
    j = pl.program_id(1)

    # Normalize the feat tile once per row tile (first j) and cache it in VMEM.
    # `scale` is folded into the [TM, 1] inverse norm; rsqrt runs on the EUP.
    @pl.when(j == 0)
    def _():
        f = feat_ref[...].astype(jnp.float32)                 # (TM, D)
        if mask_feat_rows:
            row = lax.broadcasted_iota(jnp.int32, f.shape, 0) + i * block_m
            f = jnp.where(row < b_rows, f, 1.0)
        ssq = jnp.sum(f * f, axis=-1, keepdims=True)
        if eps:
            ssq = ssq + eps
        fhat_ref[...] = (f * (scale * lax.rsqrt(ssq))).astype(matmul_dtype)

    if w_pre_normalized:
        # W already normalized, pre-transposed (D, TN) and in matmul dtype:
        # canonical (M,K)x(K,N) MXU matmul, lane-dense N output.
        out_ref[...] = jnp.dot(
            fhat_ref[...], w_ref[...],
            preferred_element_type=jnp.float32,
        ).astype(out_ref.dtype)
    else:
        # Single batch tile: fuse W normalization (W is read exactly once).
        w = w_ref[...].astype(jnp.float32)                    # (TN, D)
        if mask_w_rows:
            row = lax.broadcasted_iota(jnp.int32, w.shape, 0) + j * block_n
            w = jnp.where(row < c_rows, w, 1.0)
        ssq = jnp.sum(w * w, axis=-1, keepdims=True)
        if eps:
            ssq = ssq + eps
        w_hat = (w * lax.rsqrt(ssq)).astype(matmul_dtype)
        out_ref[...] = lax.dot_general(
            fhat_ref[...], w_hat,
            dimension_numbers=(((1,), (1,)), ((), ())),
            preferred_element_type=jnp.float32,
        ).astype(out_ref.dtype)


def normalized_inner_product_with_scale(
    feat, weights, scale=20.0, *,
    tm=512, tn=512, tc_prologue=256,
    use_bf16_operands=True, out_dtype=jnp.float32,
    eps=0.0, min_row_tiles=1, vmem_limit_bytes=None,
):
    """feat: [B, D], weights: [C, D] -> logits [B, C] = scale * cosine similarity.

    eps defaults to 0.0 to match the PyTorch module exactly (torch.div with no
    clamping); pass a small eps to guard all-zero rows if desired.
    """
    B, D = feat.shape
    C, D_w = weights.shape
    assert D == D_w, "feature_dim mismatch"

    matmul_dtype = jnp.bfloat16 if use_bf16_operands else jnp.float32

    # VMEM limit: ~3/4 of physical VMEM, capped at 100 MiB.
    # -> ~96 MiB on 128-MiB parts (v5e/v6e), 48 MiB on v7x (64 MiB part).
    if vmem_limit_bytes is None:
        try:
            cap = int(pltpu.get_tpu_info().vmem_capacity_bytes)
        except Exception:
            cap = 64 * 1024 * 1024
        vmem_limit_bytes = min((cap * 3) // 4, 100 * 1024 * 1024)

    TM = _choose_tile(tm, B, 8)      # row tile (multiple of 8 or full B)
    TN = _choose_tile(tn, C, 128)    # class tile (multiple of 128 or full C)

    # v7x (2 TensorCores): optionally force >= 2 row tiles so the "parallel"
    # i axis feeds both cores.
    if min_row_tiles > 1 and B >= 8 * min_row_tiles:
        per = ((-(-B // min_row_tiles)) + 7) // 8 * 8
        TM = min(TM, per)

    # Keep the hard double-buffered footprint under ~60% of the VMEM limit,
    # leaving headroom for in-kernel f32 temporaries / compiler scratch.
    out_bytes = jnp.dtype(out_dtype).itemsize
    mat_bytes = jnp.dtype(matmul_dtype).itemsize
    in_bytes = jnp.dtype(feat.dtype).itemsize

    def hard_footprint(tm_, tn_):
        return (2 * tm_ * D * in_bytes        # feat double buffer
                + 2 * tn_ * D * 4             # W double buffer (worst case f32)
                + 2 * tm_ * tn_ * out_bytes   # output double buffer
                + tm_ * D * mat_bytes)        # cached normalized-feat scratch

    budget = (vmem_limit_bytes * 3) // 5
    while hard_footprint(TM, TN) > budget and TN >= 256 and TN % 256 == 0:
        TN //= 2
    while hard_footprint(TM, TN) > budget and TM >= 16 and TM % 16 == 0:
        TM //= 2

    n_i = pl.cdiv(B, TM)
    n_j = pl.cdiv(C, TN)

    # With >= 2 row tiles, W would otherwise be re-read (f32) and re-normalized
    # per row tile; the one-time prologue halves the dominant W HBM stream.
    use_prologue = n_i >= 2

    if use_prologue:
        w_arg = _normalize_weights_transposed(
            weights, tc=tc_prologue, matmul_dtype=matmul_dtype, eps=eps,
            vmem_limit_bytes=vmem_limit_bytes)                  # (D, C)
        w_spec = pl.BlockSpec((D, TN), lambda i, j: (0, j))
    else:
        w_arg = weights                                         # (C, D) raw
        w_spec = pl.BlockSpec((TN, D), lambda i, j: (j, 0))

    kernel = partial(
        _nip_main_kernel,
        scale=float(scale), matmul_dtype=matmul_dtype,
        w_pre_normalized=use_prologue,
        block_m=TM, block_n=TN, b_rows=B, c_rows=C,
        mask_feat_rows=(B % TM != 0), mask_w_rows=(C % TN != 0),
        eps=float(eps))

    return pl.pallas_call(
        kernel,
        out_shape=jax.ShapeDtypeStruct((B, C), out_dtype),
        grid_spec=pltpu.PrefetchScalarGridSpec(
            num_scalar_prefetch=0,
            grid=(n_i, n_j),
            in_specs=[
                # feat tile depends only on i -> not re-DMA'd while j varies.
                pl.BlockSpec((TM, D), lambda i, j: (i, 0)),
                w_spec,
            ],
            out_specs=pl.BlockSpec((TM, TN), lambda i, j: (i, j)),
            # Cached normalized (scale-folded) feat tile, reused across j.
            scratch_shapes=[pltpu.VMEM((TM, D), matmul_dtype)],
        ),
        compiler_params=pltpu.CompilerParams(
            # i tiles independent (megacore); j must be "arbitrary" because of
            # the pl.when(j == 0) feat-cache init.
            dimension_semantics=("parallel", "arbitrary"),
            vmem_limit_bytes=int(vmem_limit_bytes),
        ),
    )(feat, w_arg)


# --------------------------------------------------------------------------
# Reference / init helpers and self-test.
# --------------------------------------------------------------------------
def xavier_uniform(key, shape):
    """Deterministic nn.init.xavier_uniform_ for a [class_num, feature_dim] weight."""
    fan_out, fan_in = shape
    bound = math.sqrt(6.0 / (fan_in + fan_out))
    return jax.random.uniform(key, shape, dtype=jnp.float32,
                              minval=-bound, maxval=bound)


def reference(feat, weights, scale=20.0):
    f_hat = feat / jnp.linalg.norm(feat, axis=-1, keepdims=True)
    w_hat = weights / jnp.linalg.norm(weights, axis=-1, keepdims=True)
    return scale * (f_hat @ w_hat.T)


if __name__ == "__main__":
    key = jax.random.PRNGKey(0)
    k_feat, k_w, k_feat2, k_w2 = jax.random.split(key, 4)

    # Small shapes consistent with the module: feature_dim=32, class_num=16, batch=8.
    batch, feature_dim, class_num, scale = 8, 32, 16, 20.0
    feat = jax.random.normal(k_feat, (batch, feature_dim), dtype=jnp.float32)
    weights = xavier_uniform(k_w, (class_num, feature_dim))
    ref = reference(feat, weights, scale)

    # Single row tile -> fused path; f32 operands for a tight check.
    out_f32 = jax.block_until_ready(
        normalized_inner_product_with_scale(feat, weights, scale,
                                            use_bf16_operands=False))
    assert out_f32.shape == (batch, class_num)
    assert jnp.allclose(out_f32, ref, atol=2e-4, rtol=2e-4), "f32 fused path mismatch"

    # Default bf16-MXU-operand path (looser tolerance: operand precision).
    out_bf16 = jax.block_until_ready(
        normalized_inner_product_with_scale(feat, weights, scale))
    assert out_bf16.shape == (batch, class_num)
    assert jnp.allclose(out_bf16, ref, atol=0.3, rtol=0.02), "bf16 fused path mismatch"

    # Multi-row-tile case: exercises the W prologue (normalize + transpose),
    # ragged B/C tails (no jnp.pad anywhere), and the 2-D grid + feat cache.
    B2, C2, D2 = 72, 200, 96
    feat2 = jax.random.normal(k_feat2, (B2, D2), dtype=jnp.float32)
    weights2 = xavier_uniform(k_w2, (C2, D2))
    ref2 = reference(feat2, weights2, scale)

    out2 = jax.block_until_ready(
        normalized_inner_product_with_scale(
            feat2, weights2, scale, tm=32, tn=128, tc_prologue=128,
            use_bf16_operands=False))
    assert out2.shape == (B2, C2)
    assert jnp.allclose(out2, ref2, atol=2e-4, rtol=2e-4), "f32 prologue path mismatch"

    out2b = jax.block_until_ready(
        normalized_inner_product_with_scale(
            feat2, weights2, scale, tm=32, tn=128, tc_prologue=128,
            out_dtype=jnp.bfloat16))
    assert out2b.shape == (B2, C2) and out2b.dtype == jnp.bfloat16
    assert jnp.allclose(out2b.astype(jnp.float32), ref2, atol=0.5, rtol=0.05), \
        "bf16 prologue path mismatch"

    print("KERNEL_OK")
</pallas_src>

<mosaic_0001>
module attributes {stable_mosaic.version = 11 : i64} {
  func.func @_nip_main_kernel(%arg0: i32, %arg1: i32, %arg2: memref<8x32xf32, #tpu.memory_space<vmem>>, %arg3: memref<16x32xf32, #tpu.memory_space<vmem>>, %arg4: memref<8x16xf32, #tpu.memory_space<vmem>>, %arg5: memref<8x32xf32, #tpu.memory_space<vmem>>) attributes {dimension_semantics = [#tpu.dimension_semantics<parallel>, #tpu.dimension_semantics<arbitrary>], iteration_bounds = array<i64: 1, 1>, scalar_prefetch = 0 : i64, scratch_operands = 1 : i64, tpu.core_type = #tpu.core_type<tc>, window_params = [{transform_indices = @transform_0, window_bounds = array<i64: 8, 32>}, {transform_indices = @transform_1, window_bounds = array<i64: 16, 32>}, {transform_indices = @transform_2, window_bounds = array<i64: 8, 16>}]} {
    %c0_i32 = arith.constant 0 : i32
    %0 = arith.cmpi eq, %arg1, %c0_i32 : i32
    %1 = arith.extui %0 : i1 to i32
    %c0_i32_0 = arith.constant 0 : i32
    %2 = arith.cmpi ne, %1, %c0_i32_0 : i32
    scf.if %2 {
      %c0_7 = arith.constant 0 : index
      %c0_8 = arith.constant 0 : index
      %13 = vector.load %arg2[%c0_7, %c0_8] : memref<8x32xf32, #tpu.memory_space<vmem>>, vector<8x32xf32>
      %14 = arith.mulf %13, %13 : vector<8x32xf32>
      %cst_9 = arith.constant dense<0.000000e+00> : vector<8xf32>
      %15 = vector.multi_reduction <add>, %14, %cst_9 [1] : vector<8x32xf32> to vector<8xf32>
      %16 = vector.shape_cast %15 : vector<8xf32> to vector<8x1xf32>
      %17 = math.rsqrt %16 : vector<8x1xf32>
      %cst_10 = arith.constant 2.000000e+01 : f32
      %18 = vector.broadcast %cst_10 : f32 to vector<8x1xf32>
      %19 = arith.mulf %18, %17 : vector<8x1xf32>
      %20 = vector.broadcast %19 : vector<8x1xf32> to vector<8x32xf32>
      %21 = arith.mulf %13, %20 : vector<8x32xf32>
      %c0_11 = arith.constant 0 : index
      %c0_12 = arith.constant 0 : index
      %22 = vector.load %arg5[%c0_11, %c0_12] : memref<8x32xf32, #tpu.memory_space<vmem>>, vector<8x32xf32>
      tpu.vector_store %arg5[%c0_11, %c0_12], %21 {strides = array<i32>} : memref<8x32xf32, #tpu.memory_space<vmem>>, vector<8x32xf32>,
    } else {
    }
    %c0 = arith.constant 0 : index
    %c0_1 = arith.constant 0 : index
    %3 = vector.load %arg3[%c0, %c0_1] : memref<16x32xf32, #tpu.memory_space<vmem>>, vector<16x32xf32>
    %4 = arith.mulf %3, %3 : vector<16x32xf32>
    %cst = arith.constant dense<0.000000e+00> : vector<16xf32>
    %5 = vector.multi_reduction <add>, %4, %cst [1] : vector<16x32xf32> to vector<16xf32>
    %6 = vector.shape_cast %5 : vector<16xf32> to vector<16x1xf32>
    %7 = math.rsqrt %6 : vector<16x1xf32>
    %8 = vector.broadcast %7 : vector<16x1xf32> to vector<16x32xf32>
    %9 = arith.mulf %3, %8 : vector<16x32xf32>
    %c0_2 = arith.constant 0 : index
    %c0_3 = arith.constant 0 : index
    %10 = vector.load %arg5[%c0_2, %c0_3] : memref<8x32xf32, #tpu.memory_space<vmem>>, vector<8x32xf32>
    %cst_4 = arith.constant dense<0.000000e+00> : vector<8x16xf32>
    %11 = tpu.matmul %10, %9, %cst_4 {dimension_numbers = #tpu.dot_dimension_numbers<[1], [1], [0], [0], [0, 0, 1, 0], [], []>} : vector<8x32xf32>, vector<16x32xf32>, vector<8x16xf32> -> vector<8x16xf32>
    %c0_5 = arith.constant 0 : index
    %c0_6 = arith.constant 0 : index
    %12 = vector.load %arg4[%c0_5, %c0_6] : memref<8x16xf32, #tpu.memory_space<vmem>>, vector<8x16xf32>
    tpu.vector_store %arg4[%c0_5, %c0_6], %11 {strides = array<i32>} : memref<8x16xf32, #tpu.memory_space<vmem>>, vector<8x16xf32>,
    return
  }
  func.func @transform_0(%arg0: i32, %arg1: i32) -> (i32, i32) {
    %c0_i32 = arith.constant 0 : i32
    %c0_i32_0 = arith.constant 0 : i32
    return %arg0, %c0_i32 : i32, i32
  }
  func.func @transform_1(%arg0: i32, %arg1: i32) -> (i32, i32) {
    %c0_i32 = arith.constant 0 : i32
    %c0_i32_0 = arith.constant 0 : i32
    return %arg1, %c0_i32 : i32, i32
  }
  func.func @transform_2(%arg0: i32, %arg1: i32) -> (i32, i32) {
    %c0_i32 = arith.constant 0 : i32
    return %arg0, %arg1 : i32, i32
  }
}

</mosaic_0001>

<llo_original>
// kernel: tpu_custom_call.1
$region0: #{tpu_custom_call.1}
  #allocation0 [shape = 'u32[]', space=smem, size = 0x4, offset = 0x4, fixed_abs, tag = 'smem constant byte address 0x4 - core index']
  #allocation1 [shape = 'u32[144,128]{1,0:T(1,128)}', space=vmem, size = 0x12000, scoped, tag = 'internal scratch']
  #allocation2 [shape = 'f32[8,32]{1,0:T(8,128)}', space=vmem, size = 0x1000, scoped, tag = 'scratch operand']
  %s0 = inlined_call_operand.hbm [shape: f32[8,32], index: 0, kind: input, shape index: {}]
  %s1 = inlined_call_operand.hbm [shape: f32[16,32], index: 1, kind: input, shape index: {}]
  %s2 = inlined_call_operand.hbm [shape: f32[8,16], index: 2, kind: output, shape index: {}]
  %s3 = sld [smem:[#allocation0]]
  $region30: #{tpu_custom_call.1} parent=0
    _
  %s5 = ssub.s32 1, %s3
  %s6 = scalar_select 0, %s5, %s3
  $region1: #{tpu_custom_call.1} parent=0
    #allocation3 [shape = 'u8[4096]{0}', space=vmem, size = 0x1000, scoped, tag = 'input window, operand 0, single buffered']
    #allocation4 [shape = 's32[1]{0}', space=sflag, size = 0x4, scoped, tag = 'scoped memory for tpu_custom_call.1']
    #allocation5 [shape = 's32[1]{0}', space=sflag, size = 0x4, scoped, tag = 'scoped memory for tpu_custom_call.1']
    #allocation6 [shape = 'u8[8192]{0}', space=vmem, size = 0x2000, scoped, tag = 'input window, operand 1, single buffered']
    #allocation7 [shape = 's32[1]{0}', space=sflag, size = 0x4, scoped, tag = 'scoped memory for tpu_custom_call.1']
    #allocation8 [shape = 'u8[4096]{0}', space=vmem, size = 0x1000, scoped, tag = 'output window, operand 0, single buffered']
    %7 = vsyncpa [#allocation4], 0
    %8 = vsyncpa [#allocation7], 0
    %9 = vsyncpa [#allocation5], 0
    // Predicated region
    $region2: #{tpu_custom_call.1} parent=1 // pred_check
      _
    $region3: #{tpu_custom_call.1} parent=1 // pred_check_branch
      %11 = sbr.rel (0) target = $region5
    $region4: #{tpu_custom_call.1} parent=1 // pred_region
      %s13 = ssub.s32 128, 128
      %14 = vsyncadd [#allocation4], %s13
      %s16 = sshll.u32 [#allocation3], 4
      %s17 = int_to_ptr.vmem [resolvable:$true] %s16
      %19 = dma.hbm_to_vmem [thread:$0]  %s0, 128, %s17, [#allocation4]
    $region5: #{tpu_custom_call.1} parent=1 // pred_fallthru
      _
    // Predicated region
    $region6: #{tpu_custom_call.1} parent=1 // pred_check
      _
    $region7: #{tpu_custom_call.1} parent=1 // pred_check_branch
      %21 = sbr.rel (0) target = $region9
    $region8: #{tpu_custom_call.1} parent=1 // pred_region
      %s23 = ssub.s32 256, 256
      %24 = vsyncadd [#allocation7], %s23
      %s25 = sshll.u32 [#allocation6], 4
      %s26 = int_to_ptr.vmem [resolvable:$true] %s25
      %31 = dma.hbm_to_vmem [thread:$0]  %s1, 256, %s26, [#allocation7], 128, 128, 8
    $region9: #{tpu_custom_call.1} parent=1 // pred_fallthru
      _
    // Predicated region
    $region10: #{tpu_custom_call.1} parent=1 // pred_check
      _
    $region11: #{tpu_custom_call.1} parent=1 // pred_check_branch
      %33 = sbr.rel (0) target = $region13
    $region12: #{tpu_custom_call.1} parent=1 // pred_region
      %34 = dma.done [#allocation4], 128
    $region13: #{tpu_custom_call.1} parent=1 // pred_fallthru
      _
    // Predicated region
    $region14: #{tpu_custom_call.1} parent=1 // pred_check
      _
    $region15: #{tpu_custom_call.1} parent=1 // pred_check_branch
      %36 = sbr.rel (0) target = $region17
    $region16: #{tpu_custom_call.1} parent=1 // pred_region
      %37 = dma.done [#allocation7], 256
    $region17: #{tpu_custom_call.1} parent=1 // pred_fallthru
      _
    %p38 = scmp.eq.s32.totalorder 0, 0
    // Predicated region
    $region18: #{tpu_custom_call.1} parent=1 // pred_check
      %p39 = pneg %p38
    $region19: #{tpu_custom_call.1} parent=1 // pred_check_branch
      %41 = sbr.rel (%p39) target = $region21
    $region20: #{tpu_custom_call.1} parent=1 // pred_region
      %v42 = vld [vmem:[#allocation3] sm:$0xff]
      %v43 = vmul.f32 %v42, %v42
      %vm44 = vcmask 261120
      %v45 = vsel %vm44, %v43, 0.0
      %46 = vadd.xlane.f32.xlu0 %v45
      %v47 = vpop.xlane.xlu0 %46
      %v48 = vrsqrt.pop %v47
      %v49 = vmul.f32 %v48, 20.0
      %v50 = vmul.f32 %v42, %v49
      %51 = vst.msk [vmem:[#allocation2] sm:$0xff] %vm44, %v50
    $region21: #{tpu_custom_call.1} parent=1 // pred_fallthru
      _
    %v52 = vld [vmem:[#allocation6] sm:$0xff]
    %v53 = vld [vmem:[#allocation6 + $0x8] sm:$0xff]
    %v54 = vmul.f32 %v52, %v52
    %v55 = vmul.f32 %v53, %v53
    %vm56 = vcmask 261120
    %v57 = vsel %vm56, %v54, 0.0
    %58 = vadd.xlane.f32.xlu0 %v57
    %v59 = vpop.xlane.xlu0 %58
    %v60 = vsel %vm56, %v55, 0.0
    %61 = vadd.xlane.f32.xlu0 %v60
    %v62 = vpop.xlane.xlu0 %61
    %v63 = vrsqrt.pop %v59
    %v64 = vrsqrt.pop %v62
    %v65 = vmul.f32 %v52, %v63
    %v66 = vmul.f32 %v53, %v64
    %v67 = vld [vmem:[#allocation2] sm:$0xff]
    %v69 = vsel %vm56, %v67, 0
    %v72 = vsel %vm56, %v65, 0
    %v75 = vsel %vm56, %v66, 0
    %77 = vmatprep.subr.mxu0 0.0
    %78 = vmatpush1.xpose.msra.mxu0 %v72
    %79 = vmatprep.subr.mxu0 0.0
    %80 = vmatpush1.xpose.msra.mxu0 %v75
    %81 = vmatprep.subr.mxu0 0.0
    %82 = vmatpush1.xpose.msra.mxu0 0.0
    %83 = vmatprep.subr.mxu0 0.0
    %84 = vmatpush1.xpose.msra.mxu0 0.0
    %85 = vmatprep.subr.mxu0 0.0
    %86 = vmatpush1.xpose.msra.mxu0 0.0
    %87 = vmatprep.subr.mxu0 0.0
    %88 = vmatpush1.xpose.msra.mxu0 0.0
    %89 = vmatprep.subr.mxu0 0.0
    %90 = vmatpush1.xpose.msra.mxu0 0.0
    %91 = vmatprep.subr.mxu0 0.0
    %92 = vmatpush1.xpose.msra.mxu0 0.0
    %93 = vmatprep.subr.mxu0 0.0
    %94 = vmatpush1.xpose.msra.mxu0 0.0
    %95 = vmatprep.subr.mxu0 0.0
    %96 = vmatpush1.xpose.msra.mxu0 0.0
    %97 = vmatprep.subr.mxu0 0.0
    %98 = vmatpush1.xpose.msra.mxu0 0.0
    %99 = vmatprep.subr.mxu0 0.0
    %100 = vmatpush1.xpose.msra.mxu0 0.0
    %101 = vmatprep.subr.mxu0 0.0
    %102 = vmatpush1.xpose.msra.mxu0 0.0
    %103 = vmatprep.subr.mxu0 0.0
    %104 = vmatpush1.xpose.msra.mxu0 0.0
    %105 = vmatprep.subr.mxu0 0.0
    %106 = vmatpush1.xpose.msra.mxu0 0.0
    %107 = vmatprep.subr.mxu0 0.0
    %108 = vmatpush1.xpose.msra.mxu0 0.0
    %109 = vmatprep.subr.mxu0 0.0
    %110 = vmatpush1.xpose.msra.mxu0 0.0
    %111 = vmatprep.subr.mxu0 0.0
    %112 = vmatpush1.xpose.msra.mxu0 0.0
    %113 = vmatprep.subr.mxu0 0.0
    %114 = vmatpush1.xpose.msra.mxu0 0.0
    %115 = vmatprep.subr.mxu0 0.0
    %116 = vmatpush1.xpose.msra.mxu0 0.0
    %117 = vmatprep.subr.mxu0 0.0
    %118 = vmatpush1.xpose.msra.mxu0 0.0
    %119 = vmatprep.subr.mxu0 0.0
    %120 = vmatpush1.xpose.msra.mxu0 0.0
    %121 = vmatprep.subr.mxu0 0.0
    %122 = vmatpush1.xpose.msra.mxu0 0.0
    %123 = vmatprep.subr.mxu0 0.0
    %124 = vmatpush1.xpose.msra.mxu0 0.0
    %125 = vmatprep.subr.mxu0 0.0
    %126 = vmatpush1.xpose.msra.mxu0 0.0
    %127 = vmatprep.subr.mxu0 0.0
    %128 = vmatpush1.xpose.msra.mxu0 0.0
    %129 = vmatprep.subr.mxu0 0.0
    %130 = vmatpush1.xpose.msra.mxu0 0.0
    %131 = vmatprep.subr.mxu0 0.0
    %132 = vmatpush1.xpose.msra.mxu0 0.0
    %133 = vmatprep.subr.mxu0 0.0
    %134 = vmatpush1.xpose.msra.mxu0 0.0
    %135 = vmatprep.subr.mxu0 0.0
    %136 = vmatpush1.xpose.msra.mxu0 0.0
    %137 = vmatprep.subr.mxu0 0.0
    %138 = vmatpush1.xpose.msra.mxu0 0.0
    %139 = vmatprep.subr.mxu0 0.0
    %140 = vmatpush1.xpose.msra.mxu0 0.0
    %141 = vmatprep.mubr.f32.mxu0 0.0
    %142 = vmatmul.mubr.f32.gmra.mrb[0].mxu0 %v69
    %v143 = vpop.f32.mrb[0].mxu0
    %v144 = vadd.f32 0.0, %v143
    %v145 = vpop.f32.mrb[0].mxu0
    %146 = vdwg.mxu0
    %vm147 = vcmask 130048
    %148 = vst.msk [vmem:[#allocation8] sm:$0xff] %vm147, %v144
    // Predicated region
    $region22: #{tpu_custom_call.1} parent=1 // pred_check
      _
    $region23: #{tpu_custom_call.1} parent=1 // pred_check_branch
      %150 = sbr.rel (0) target = $region25
    $region24: #{tpu_custom_call.1} parent=1 // pred_region
      %s152 = ssub.s32 128, 128
      %153 = vsyncadd [#allocation5], %s152
      %s155 = sshll.u32 [#allocation8], 4
      %s156 = int_to_ptr.vmem [resolvable:$true] %s155
      %158 = dma.vmem_to_hbm [thread:$0]  %s156, 128, %s2, [#allocation5]
    $region25: #{tpu_custom_call.1} parent=1 // pred_fallthru
      _
    // Predicated region
    $region26: #{tpu_custom_call.1} parent=1 // pred_check
      _
    $region27: #{tpu_custom_call.1} parent=1 // pred_check_branch
      %160 = sbr.rel (0) target = $region29
    $region28: #{tpu_custom_call.1} parent=1 // pred_region
      %161 = dma.done [#allocation5], 128
    $region29: #{tpu_custom_call.1} parent=1 // pred_fallthru
      _
    %162 = vsyncpa [#allocation4], 1
    %163 = vsyncpa [#allocation7], 1
    %164 = vsyncpa [#allocation5], 1

</llo_original>
